<compile_context>
chip_gen: v7x
topology: tpu7x:2x2x1
jax: 0.10.0
libtpu: 0.0.40
codegen_flags: <defaults>
</compile_context>

<pallas_src>
import functools

import jax
import jax.numpy as jnp
import numpy as np
from jax import lax
from jax.experimental import pallas as pl
from jax.experimental.pallas import tpu as pltpu


# ---------------------------------------------------------------------------
# Pallas kernels
# ---------------------------------------------------------------------------
def meta_mlp_kernel(coords_t_ref, w1t_ref, b1t_ref, w2t_ref, b2t_ref, out_ref):
    """Meta MLP(2 -> hidden -> H), computed transposed so the output is lane-dense.

    coords_t: (2, S*S)     w1t: (hidden, 2)   b1t: (hidden, 1)
    w2t:      (H, hidden)  b2t: (H, 1)        out: (H, S*S)   (last dim lane-dense)

    Layer 1 has a contracting dim of 2, so it is done as two broadcasted
    multiply-adds on the VPU instead of wasting an MXU issue.
    """
    h = (w1t_ref[:, 0:1] * coords_t_ref[0:1, :]
         + w1t_ref[:, 1:2] * coords_t_ref[1:2, :]
         + b1t_ref[...])                                      # (hidden, S*S)
    h = jnp.maximum(h, 0.0)          # ReLU; meta-MLP dropout is identity in eval
    out_ref[...] = (jnp.dot(w2t_ref[...], h, preferred_element_type=jnp.float32)
                    + b2t_ref[...])


def window_attn_kernel(x_ref, wqkv_ref, bqkv_ref, wproj_ref, bproj_ref,
                       bias_ref, tau_scale_ref, o_ref, *,
                       b_tile, seq_len, num_heads, head_dim,
                       compute_dtype, lane_dense):
    """Swin-v2 cosine window attention for B_TILE windows at once.

    x_ref / o_ref : (B_TILE, S*D) if lane_dense else (B_TILE*S, D)
    wqkv: (D, 3D)  bqkv: (1, 3D)  wproj: (D, D)  bproj: (1, D)
    bias: (H, rows, rows) block-diagonal rel-pos bias with -1e9 cross-window mask
    tau_scale: (H, hd) = 1/clamp(tau, 0.01) replicated along head_dim
    """
    BT, S, H, hd = b_tile, seq_len, num_heads, head_dim
    D = H * hd
    rows = BT * S

    # ---- fused QKV projection on the whole row slab (rows = BT*S feeds the MXU).
    if lane_dense:
        x = x_ref[...].reshape(rows, D)
    else:
        x = x_ref[...]
    x = x.astype(compute_dtype)
    qkv = (jnp.dot(x, wqkv_ref[...], preferred_element_type=jnp.float32)
           + bqkv_ref[...])                                       # (rows, 3D) f32

    # ---- per-head block-diagonal attention over the whole slab (lane-dense).
    acc = jnp.zeros((rows, D), jnp.float32)
    for h in range(H):                     # H small; static lane slices, no relayout
        lo, hi = h * hd, (h + 1) * hd
        q = qkv[:, 0 * D + lo:0 * D + hi]                          # (rows, hd) f32
        k = qkv[:, 1 * D + lo:1 * D + hi]
        v = qkv[:, 2 * D + lo:2 * D + hi]

        # cosine-sim normalization: per-row rsqrt on the EUP (O(rows*hd));
        # 1/clamp(tau, 0.01) folded into the q scale.
        q = q * (lax.rsqrt(jnp.maximum(jnp.sum(q * q, -1, keepdims=True), 1e-12))
                 * tau_scale_ref[h:h + 1, :])
        k = k * lax.rsqrt(jnp.maximum(jnp.sum(k * k, -1, keepdims=True), 1e-12))

        qc = q.astype(compute_dtype)
        kc = k.astype(compute_dtype)
        # scores over the whole slab: (rows, rows); cross-window entries are
        # killed by the -1e9 blocks baked into bias_ref.
        s = lax.dot_general(qc, kc, (((1,), (1,)), ((), ())),
                            preferred_element_type=jnp.float32)
        s = s + bias_ref[h]

        # ---- softmax in f32; denominator reciprocal on the EUP.
        s = s - jnp.max(s, axis=-1, keepdims=True)
        p = jnp.exp(s)
        p = p * pl.reciprocal(jnp.sum(p, axis=-1, keepdims=True), approx=True)
        # attn_drop / proj_drop are identity in eval mode.

        ctx = jnp.dot(p.astype(compute_dtype), v.astype(compute_dtype),
                      preferred_element_type=jnp.float32)          # (rows, hd)
        # fold the per-head row slice of the output projection: avoids any
        # lane concat / head-major transpose before the proj matmul.
        acc = acc + jnp.dot(ctx.astype(compute_dtype), wproj_ref[lo:hi, :],
                            preferred_element_type=jnp.float32)

    out = acc + bproj_ref[...]
    if lane_dense:
        out = out.reshape(BT, S * D)        # lane-dense (512-wide) unmasked store
    o_ref[...] = out.astype(o_ref.dtype)


# ---------------------------------------------------------------------------
# Host-side wrappers
# ---------------------------------------------------------------------------
def make_relative_coordinates_log(window_size):
    wh, ww = window_size
    coords = np.stack(np.meshgrid(np.arange(wh), np.arange(ww), indexing="ij"),
                      axis=0).reshape(2, -1)                        # (2, S)
    rel = coords[:, :, None] - coords[:, None, :]                   # (2, S, S)
    rel = rel.transpose(1, 2, 0).reshape(-1, 2).astype(np.float32)  # (S*S, 2)
    rel_log = np.sign(rel) * np.log1p(np.abs(rel))
    return jnp.asarray(rel_log)


def precompute_relative_position_bias(params, window_size, num_heads):
    """Relative-position bias (H, S, S). Depends only on params / window_size —
    computed once per parameter set (hoisted out of the forward)."""
    S = window_size[0] * window_size[1]
    hidden = params["mw1"].shape[1]
    coords_t = make_relative_coordinates_log(window_size).T         # (2, S*S)
    w1t = params["mw1"].T                                           # (hidden, 2)
    b1t = params["mb1"].reshape(hidden, 1)
    w2t = params["mw2"].T                                           # (H, hidden)
    b2t = params["mb2"].reshape(num_heads, 1)
    out = pl.pallas_call(
        meta_mlp_kernel,
        out_shape=jax.ShapeDtypeStruct((num_heads, S * S), jnp.float32),
    )(coords_t, w1t, b1t, w2t, b2t)                                  # lane-dense
    return out.reshape(num_heads, S, S)


def _pick_b_tile(bsz, seq_len, target_rows=256):
    """Largest divisor of bsz whose slab (b_tile*seq_len rows) is <= target.

    target_rows=256 matches the v6e/v7x 2x256^2 MXU and keeps the per-head
    (rows, rows) scores tile at 256 KiB. If the whole batch fits one step,
    split into 2 grid steps so both v7x TensorCores get work.
    """
    bt = max(1, min(bsz, target_rows // max(seq_len, 1)))
    while bsz % bt:
        bt -= 1
    if bsz // bt == 1 and bsz % 2 == 0 and bsz >= 2:
        bt = bsz // 2
    return bt


def prepare_wmha_params(params, *, num_heads, window_size, b_tile,
                        compute_dtype=jnp.bfloat16):
    """One-time parameter prep: cast MXU-operand weights, fold 1/tau, and build
    the block-diagonal bias+mask (H, rows, rows). Cache and reuse across calls."""
    S = window_size[0] * window_size[1]
    D = params["wqkv"].shape[0]
    hd = D // num_heads
    rows = b_tile * S

    bias = precompute_relative_position_bias(params, window_size, num_heads)
    bias = bias.astype(jnp.float32)                                  # (H, S, S)

    # Block-diagonal bias + cross-window mask: bias on the per-window diagonal
    # (S,S) blocks, -1e9 elsewhere. ~H*rows^2*4 bytes (1 MiB at rows=256).
    block_mask = jnp.kron(jnp.eye(b_tile, dtype=jnp.float32),
                          jnp.ones((S, S), jnp.float32))             # (rows, rows)
    bias_bd = jnp.where(block_mask[None] > 0.0,
                        jnp.tile(bias, (1, b_tile, b_tile)),
                        jnp.float32(-1e9))                           # (H, rows, rows)

    inv_tau = 1.0 / jnp.maximum(params["tau"].astype(jnp.float32), 0.01)
    tau_scale = jnp.tile(inv_tau[:, None], (1, hd))                  # (H, hd)

    return {
        "b_tile": b_tile,
        "compute_dtype": compute_dtype,
        # MXU operands in compute_dtype (bf16 halves operand DMA on v6e/v7x);
        # biases and all elementwise math stay f32.
        "wqkv": params["wqkv"].astype(compute_dtype),
        "wproj": params["wproj"].astype(compute_dtype),
        "bqkv": params["bqkv"].astype(jnp.float32).reshape(1, 3 * D),
        "bproj": params["bproj"].astype(jnp.float32).reshape(1, D),
        "tau_scale": tau_scale,
        "bias_bd": bias_bd,
    }


def window_multi_head_attention(x, params=None, *, num_heads, window_size,
                                compute_dtype=jnp.bfloat16, b_tile=None,
                                prepared=None, mask=None):
    # TODO(synk): optional attention `mask` (shifted-window SW-MSA) not implemented.
    assert mask is None
    bsz, S, D = x.shape
    assert S == window_size[0] * window_size[1]
    assert D % num_heads == 0
    head_dim = D // num_heads

    if prepared is not None:
        b_tile = prepared["b_tile"]
        compute_dtype = prepared["compute_dtype"]
    else:
        if b_tile is None:
            b_tile = _pick_b_tile(bsz, S)
        prepared = prepare_wmha_params(params, num_heads=num_heads,
                                       window_size=window_size, b_tile=b_tile,
                                       compute_dtype=compute_dtype)
    assert bsz % b_tile == 0
    rows = b_tile * S
    grid = (bsz // b_tile,)

    # Lane-dense I/O: present x/o as (bsz, S*D) so the out block's last dim is
    # a multiple of 128 (unmasked vst); otherwise fall back to (bsz*S, D).
    lane_dense = (S * D) % 128 == 0 and (b_tile % 8 == 0 or b_tile == bsz)
    if lane_dense:
        x_in = x.reshape(bsz, S * D)
        io_block = (b_tile, S * D)
        out_shape = jax.ShapeDtypeStruct((bsz, S * D), x.dtype)
    else:
        x_in = x.reshape(bsz * S, D)
        io_block = (rows, D)
        out_shape = jax.ShapeDtypeStruct((bsz * S, D), x.dtype)

    kernel = functools.partial(
        window_attn_kernel, b_tile=b_tile, seq_len=S, num_heads=num_heads,
        head_dim=head_dim, compute_dtype=compute_dtype, lane_dense=lane_dense)

    out = pl.pallas_call(
        kernel,
        out_shape=out_shape,
        grid=grid,
        in_specs=[
            pl.BlockSpec(io_block, lambda b: (b, 0)),                    # x slab
            pl.BlockSpec((D, 3 * D), lambda b: (0, 0)),                  # wqkv
            pl.BlockSpec((1, 3 * D), lambda b: (0, 0)),                  # bqkv
            pl.BlockSpec((D, D), lambda b: (0, 0)),                      # wproj
            pl.BlockSpec((1, D), lambda b: (0, 0)),                      # bproj
            pl.BlockSpec((num_heads, rows, rows), lambda b: (0, 0, 0)),  # bias+mask
            pl.BlockSpec((num_heads, head_dim), lambda b: (0, 0)),       # 1/tau
        ],
        out_specs=pl.BlockSpec(io_block, lambda b: (b, 0)),
        compiler_params=pltpu.CompilerParams(
            dimension_semantics=("parallel",)),   # grid>=2 -> both v7x TCs busy
    )(x_in, prepared["wqkv"], prepared["bqkv"], prepared["wproj"],
      prepared["bproj"], prepared["bias_bd"], prepared["tau_scale"])
    return out.reshape(bsz, S, D)


# ---------------------------------------------------------------------------
# Pure-JAX reference (mirrors the PyTorch forward, eval mode)
# ---------------------------------------------------------------------------
def reference(x, params, *, num_heads, window_size):
    bsz, S, D = x.shape
    hd = D // num_heads
    qkv = x @ params["wqkv"] + params["bqkv"][0]
    qkv = qkv.reshape(bsz, S, 3, num_heads, hd).transpose(2, 0, 3, 1, 4)
    q, k, v = qkv[0], qkv[1], qkv[2]                                 # (B,H,S,hd)
    qn = jnp.linalg.norm(q, axis=-1, keepdims=True)
    kn = jnp.linalg.norm(k, axis=-1, keepdims=True)
    denom = qn @ jnp.swapaxes(kn, -2, -1)
    attn = q @ jnp.swapaxes(k, -2, -1) / jnp.maximum(denom, 1e-6)
    attn = attn / jnp.maximum(params["tau"], 0.01).reshape(1, num_heads, 1, 1)

    rel_log = make_relative_coordinates_log(window_size)
    h1 = jnp.maximum(rel_log @ params["mw1"] + params["mb1"][0], 0.0)
    bias = (h1 @ params["mw2"] + params["mb2"][0]).T.reshape(num_heads, S, S)[None]
    attn = attn + bias
    attn = jax.nn.softmax(attn, axis=-1)
    out = (attn @ v).transpose(0, 2, 1, 3).reshape(bsz, S, D)
    return out @ params["wproj"] + params["bproj"][0]


# ---------------------------------------------------------------------------
if __name__ == "__main__":
    # Small, module-consistent shapes. bsz = 32 windows so the block-diagonal
    # attention runs on 256-row lane-dense slabs (b_tile=16) and grid=(2,).
    input_dim = 32
    num_heads = 4
    window_size = (4, 4)          # seq_len = 16 = window area
    meta_hidden_dim = 384
    seq_len = window_size[0] * window_size[1]
    bsz = 32

    key = jax.random.PRNGKey(0)
    ks = jax.random.split(key, 9)
    params = {
        "wqkv":  0.02 * jax.random.normal(ks[0], (input_dim, 3 * input_dim), jnp.float32),
        "bqkv":  0.02 * jax.random.normal(ks[1], (1, 3 * input_dim), jnp.float32),
        "wproj": 0.02 * jax.random.normal(ks[2], (input_dim, input_dim), jnp.float32),
        "bproj": 0.02 * jax.random.normal(ks[3], (1, input_dim), jnp.float32),
        "tau":   jnp.ones((num_heads,), jnp.float32),
        "mw1":   0.1 * jax.random.normal(ks[4], (2, meta_hidden_dim), jnp.float32),
        "mb1":   0.1 * jax.random.normal(ks[5], (1, meta_hidden_dim), jnp.float32),
        "mw2":   0.1 * jax.random.normal(ks[6], (meta_hidden_dim, num_heads), jnp.float32),
        "mb2":   0.1 * jax.random.normal(ks[7], (1, num_heads), jnp.float32),
    }
    x = jax.random.normal(ks[8], (bsz, seq_len, input_dim), jnp.float32)

    ref = jax.block_until_ready(
        reference(x, params, num_heads=num_heads, window_size=window_size))

    # bf16 MXU-operand path (default for v6e/v7x): parameters prepared ONCE
    # (weight casts, 1/tau fold, block-diagonal bias+mask) and reused.
    b_tile = _pick_b_tile(bsz, seq_len)
    prepared = prepare_wmha_params(params, num_heads=num_heads,
                                   window_size=window_size, b_tile=b_tile,
                                   compute_dtype=jnp.bfloat16)
    out_bf16 = jax.block_until_ready(
        window_multi_head_attention(x, num_heads=num_heads,
                                    window_size=window_size,
                                    prepared=prepared))
    np.testing.assert_allclose(np.asarray(out_bf16), np.asarray(ref),
                               rtol=3e-2, atol=2e-3)

    # f32 MXU-operand path (v5e-friendly; tolerance loosened slightly for the
    # EUP approx reciprocal and the per-vector vs product norm clamp).
    out_f32 = jax.block_until_ready(
        window_multi_head_attention(x, params, num_heads=num_heads,
                                    window_size=window_size,
                                    compute_dtype=jnp.float32))
    np.testing.assert_allclose(np.asarray(out_f32), np.asarray(ref),
                               rtol=2e-3, atol=5e-4)

    print("KERNEL_OK")
</pallas_src>

<mosaic_0001>
module attributes {stable_mosaic.version = 11 : i64} {
  func.func @meta_mlp_kernel(%arg0: memref<2x256xf32, #tpu.memory_space<vmem>>, %arg1: memref<384x2xf32, #tpu.memory_space<vmem>>, %arg2: memref<384x1xf32, #tpu.memory_space<vmem>>, %arg3: memref<4x384xf32, #tpu.memory_space<vmem>>, %arg4: memref<4x1xf32, #tpu.memory_space<vmem>>, %arg5: memref<4x256xf32, #tpu.memory_space<vmem>>) attributes {dimension_semantics = [], scalar_prefetch = 0 : i64, scratch_operands = 0 : i64, tpu.core_type = #tpu.core_type<tc>} {
    %c0 = arith.constant 0 : index
    %c0_0 = arith.constant 0 : index
    %0 = vector.load %arg1[%c0, %c0_0] : memref<384x2xf32, #tpu.memory_space<vmem>>, vector<384x1xf32>
    %c0_1 = arith.constant 0 : index
    %c0_2 = arith.constant 0 : index
    %1 = vector.load %arg0[%c0_1, %c0_2] : memref<2x256xf32, #tpu.memory_space<vmem>>, vector<1x256xf32>
    %2 = vector.broadcast %0 : vector<384x1xf32> to vector<384x256xf32>
    %3 = vector.broadcast %1 : vector<1x256xf32> to vector<384x256xf32>
    %4 = arith.mulf %2, %3 : vector<384x256xf32>
    %c0_3 = arith.constant 0 : index
    %c1 = arith.constant 1 : index
    %5 = vector.load %arg1[%c0_3, %c1] : memref<384x2xf32, #tpu.memory_space<vmem>>, vector<384x1xf32>
    %c1_4 = arith.constant 1 : index
    %c0_5 = arith.constant 0 : index
    %6 = vector.load %arg0[%c1_4, %c0_5] : memref<2x256xf32, #tpu.memory_space<vmem>>, vector<1x256xf32>
    %7 = vector.broadcast %5 : vector<384x1xf32> to vector<384x256xf32>
    %8 = vector.broadcast %6 : vector<1x256xf32> to vector<384x256xf32>
    %9 = arith.mulf %7, %8 : vector<384x256xf32>
    %10 = arith.addf %4, %9 : vector<384x256xf32>
    %c0_6 = arith.constant 0 : index
    %c0_7 = arith.constant 0 : index
    %11 = vector.load %arg2[%c0_6, %c0_7] : memref<384x1xf32, #tpu.memory_space<vmem>>, vector<384x1xf32>
    %12 = vector.broadcast %11 : vector<384x1xf32> to vector<384x256xf32>
    %13 = arith.addf %10, %12 : vector<384x256xf32>
    %cst = arith.constant 0.000000e+00 : f32
    %14 = vector.broadcast %cst : f32 to vector<384x256xf32>
    %15 = arith.maximumf %13, %14 : vector<384x256xf32>
    %c0_8 = arith.constant 0 : index
    %c0_9 = arith.constant 0 : index
    %16 = vector.load %arg3[%c0_8, %c0_9] : memref<4x384xf32, #tpu.memory_space<vmem>>, vector<4x384xf32>
    %cst_10 = arith.constant dense<0.000000e+00> : vector<4x256xf32>
    %17 = tpu.matmul %16, %15, %cst_10 {dimension_numbers = #tpu.dot_dimension_numbers<[1], [0], [0], [1], [0, 0, 1, 1], [], []>} : vector<4x384xf32>, vector<384x256xf32>, vector<4x256xf32> -> vector<4x256xf32>
    %c0_11 = arith.constant 0 : index
    %c0_12 = arith.constant 0 : index
    %18 = vector.load %arg4[%c0_11, %c0_12] : memref<4x1xf32, #tpu.memory_space<vmem>>, vector<4x1xf32>
    %19 = vector.broadcast %18 : vector<4x1xf32> to vector<4x256xf32>
    %20 = arith.addf %17, %19 : vector<4x256xf32>
    %c0_13 = arith.constant 0 : index
    %c0_14 = arith.constant 0 : index
    %21 = vector.load %arg5[%c0_13, %c0_14] : memref<4x256xf32, #tpu.memory_space<vmem>>, vector<4x256xf32>
    tpu.vector_store %arg5[%c0_13, %c0_14], %20 {strides = array<i32>} : memref<4x256xf32, #tpu.memory_space<vmem>>, vector<4x256xf32>,
    return
  }
}

</mosaic_0001>

<llo_original>
// kernel: tpu_custom_call.1
$region0: #{tpu_custom_call.1}
  #allocation0 [shape = 'u32[]', space=smem, size = 0x4, offset = 0x4, fixed_abs, tag = 'smem constant byte address 0x4 - core index']
  #allocation1 [shape = 'u32[144,128]{1,0:T(1,128)}', space=vmem, size = 0x12000, scoped, tag = 'internal scratch']
  %s0 = inlined_call_operand.vmem [shape: f32[2,256], index: 0, kind: input, shape index: {}]
  %s1 = inlined_call_operand.vmem [shape: f32[384,2], index: 1, kind: input, shape index: {}]
  %s2 = inlined_call_operand.vmem [shape: f32[384,1], index: 2, kind: input, shape index: {}]
  %s3 = inlined_call_operand.vmem [shape: f32[4,384], index: 3, kind: input, shape index: {}]
  %s4 = inlined_call_operand.vmem [shape: f32[4,1], index: 4, kind: input, shape index: {}]
  %s5 = inlined_call_operand.hbm [shape: f32[4,256], index: 5, kind: output, shape index: {}]
  %s6 = sld [smem:[#allocation0]]
  $region30: #{tpu_custom_call.1} parent=0
    _
  %s8 = ssub.s32 1, %s6
  %s9 = scalar_select 0, %s8, %s6
  $region1: #{tpu_custom_call.1} parent=0
    #allocation2 [shape = 'u8[4096]{0}', space=vmem, size = 0x1000, scoped, tag = 'output window, operand 0, single buffered']
    #allocation3 [shape = 's32[1]{0}', space=sflag, size = 0x4, scoped, tag = 'scoped memory for tpu_custom_call.1']
    %10 = vsyncpa [#allocation3], 0
    // Predicated region
    $region2: #{tpu_custom_call.1} parent=1 // pred_check
      _
    $region3: #{tpu_custom_call.1} parent=1 // pred_check_branch
      %12 = sbr.rel (0) target = $region5
    $region4: #{tpu_custom_call.1} parent=1 // pred_region
      _
    $region5: #{tpu_custom_call.1} parent=1 // pred_fallthru
      _
    // Predicated region
    $region6: #{tpu_custom_call.1} parent=1 // pred_check
      _
    $region7: #{tpu_custom_call.1} parent=1 // pred_check_branch
      %14 = sbr.rel (0) target = $region9
    $region8: #{tpu_custom_call.1} parent=1 // pred_region
      _
    $region9: #{tpu_custom_call.1} parent=1 // pred_fallthru
      _
    // Predicated region
    $region10: #{tpu_custom_call.1} parent=1 // pred_check
      _
    $region11: #{tpu_custom_call.1} parent=1 // pred_check_branch
      %16 = sbr.rel (0) target = $region13
    $region12: #{tpu_custom_call.1} parent=1 // pred_region
      _
    $region13: #{tpu_custom_call.1} parent=1 // pred_fallthru
      _
    // Predicated region
    $region14: #{tpu_custom_call.1} parent=1 // pred_check
      _
    $region15: #{tpu_custom_call.1} parent=1 // pred_check_branch
      %18 = sbr.rel (0) target = $region17
    $region16: #{tpu_custom_call.1} parent=1 // pred_region
      _
    $region17: #{tpu_custom_call.1} parent=1 // pred_fallthru
      _
    // Predicated region
    $region18: #{tpu_custom_call.1} parent=1 // pred_check
      _
    $region19: #{tpu_custom_call.1} parent=1 // pred_check_branch
      %20 = sbr.rel (0) target = $region21
    $region20: #{tpu_custom_call.1} parent=1 // pred_region
      _
    $region21: #{tpu_custom_call.1} parent=1 // pred_fallthru
      _
    %v21 = vld [vmem:[%s1] sm:$0xff]
    %v22 = vld [vmem:[%s1 + $0x8] sm:$0xff]
    %v23 = vld [vmem:[%s1 + $0x10] sm:$0xff]
    %v24 = vld [vmem:[%s1 + $0x18] sm:$0xff]
    %v25 = vld [vmem:[%s1 + $0x20] sm:$0xff]
    %v26 = vld [vmem:[%s1 + $0x28] sm:$0xff]
    %v27 = vld [vmem:[%s1 + $0x30] sm:$0xff]
    %v28 = vld [vmem:[%s1 + $0x38] sm:$0xff]
    %v29 = vld [vmem:[%s1 + $0x40] sm:$0xff]
    %v30 = vld [vmem:[%s1 + $0x48] sm:$0xff]
    %v31 = vld [vmem:[%s1 + $0x50] sm:$0xff]
    %v32 = vld [vmem:[%s1 + $0x58] sm:$0xff]
    %v33 = vld [vmem:[%s1 + $0x60] sm:$0xff]
    %v34 = vld [vmem:[%s1 + $0x68] sm:$0xff]
    %v35 = vld [vmem:[%s1 + $0x70] sm:$0xff]
    %v36 = vld [vmem:[%s1 + $0x78] sm:$0xff]
    %v37 = vld [vmem:[%s1 + $0x80] sm:$0xff]
    %v38 = vld [vmem:[%s1 + $0x88] sm:$0xff]
    %v39 = vld [vmem:[%s1 + $0x90] sm:$0xff]
    %v40 = vld [vmem:[%s1 + $0x98] sm:$0xff]
    %v41 = vld [vmem:[%s1 + $0xa0] sm:$0xff]
    %v42 = vld [vmem:[%s1 + $0xa8] sm:$0xff]
    %v43 = vld [vmem:[%s1 + $0xb0] sm:$0xff]
    %v44 = vld [vmem:[%s1 + $0xb8] sm:$0xff]
    %v45 = vld [vmem:[%s1 + $0xc0] sm:$0xff]
    %v46 = vld [vmem:[%s1 + $0xc8] sm:$0xff]
    %v47 = vld [vmem:[%s1 + $0xd0] sm:$0xff]
    %v48 = vld [vmem:[%s1 + $0xd8] sm:$0xff]
    %v49 = vld [vmem:[%s1 + $0xe0] sm:$0xff]
    %v50 = vld [vmem:[%s1 + $0xe8] sm:$0xff]
    %v51 = vld [vmem:[%s1 + $0xf0] sm:$0xff]
    %v52 = vld [vmem:[%s1 + $0xf8] sm:$0xff]
    %v53 = vld [vmem:[%s1 + $0x100] sm:$0xff]
    %v54 = vld [vmem:[%s1 + $0x108] sm:$0xff]
    %v55 = vld [vmem:[%s1 + $0x110] sm:$0xff]
    %v56 = vld [vmem:[%s1 + $0x118] sm:$0xff]
    %v57 = vld [vmem:[%s1 + $0x120] sm:$0xff]
    %v58 = vld [vmem:[%s1 + $0x128] sm:$0xff]
    %v59 = vld [vmem:[%s1 + $0x130] sm:$0xff]
    %v60 = vld [vmem:[%s1 + $0x138] sm:$0xff]
    %v61 = vld [vmem:[%s1 + $0x140] sm:$0xff]
    %v62 = vld [vmem:[%s1 + $0x148] sm:$0xff]
    %v63 = vld [vmem:[%s1 + $0x150] sm:$0xff]
    %v64 = vld [vmem:[%s1 + $0x158] sm:$0xff]
    %v65 = vld [vmem:[%s1 + $0x160] sm:$0xff]
    %v66 = vld [vmem:[%s1 + $0x168] sm:$0xff]
    %v67 = vld [vmem:[%s1 + $0x170] sm:$0xff]
    %v68 = vld [vmem:[%s1 + $0x178] sm:$0xff]
    %v69 = vld [vmem:[%s0] ss:$2 sm:$0x3]
    %71 = vset.pattern.permute.xlu0 0
    %72 = vperm.xlu0 %71, %v21
    %v73 = vpop.permute.xlu0 %72
    %76 = vset.pattern.permute.xlu0 0
    %77 = vperm.xlu0 %76, %v22
    %v78 = vpop.permute.xlu0 %77
    %81 = vset.pattern.permute.xlu0 0
    %82 = vperm.xlu0 %81, %v23
    %v83 = vpop.permute.xlu0 %82
    %86 = vset.pattern.permute.xlu0 0
    %87 = vperm.xlu0 %86, %v24
    %v88 = vpop.permute.xlu0 %87
    %91 = vset.pattern.permute.xlu0 0
    %92 = vperm.xlu0 %91, %v25
    %v93 = vpop.permute.xlu0 %92
    %96 = vset.pattern.permute.xlu0 0
    %97 = vperm.xlu0 %96, %v26
    %v98 = vpop.permute.xlu0 %97
    %101 = vset.pattern.permute.xlu0 0
    %102 = vperm.xlu0 %101, %v27
    %v103 = vpop.permute.xlu0 %102
    %106 = vset.pattern.permute.xlu0 0
    %107 = vperm.xlu0 %106, %v28
    %v108 = vpop.permute.xlu0 %107
    %111 = vset.pattern.permute.xlu0 0
    %112 = vperm.xlu0 %111, %v29
    %v113 = vpop.permute.xlu0 %112
    %116 = vset.pattern.permute.xlu0 0
    %117 = vperm.xlu0 %116, %v30
    %v118 = vpop.permute.xlu0 %117
    %121 = vset.pattern.permute.xlu0 0
    %122 = vperm.xlu0 %121, %v31
    %v123 = vpop.permute.xlu0 %122
    %126 = vset.pattern.permute.xlu0 0
    %127 = vperm.xlu0 %126, %v32
    %v128 = vpop.permute.xlu0 %127
    %131 = vset.pattern.permute.xlu0 0
    %132 = vperm.xlu0 %131, %v33
    %v133 = vpop.permute.xlu0 %132
    %136 = vset.pattern.permute.xlu0 0
    %137 = vperm.xlu0 %136, %v34
    %v138 = vpop.permute.xlu0 %137
    %141 = vset.pattern.permute.xlu0 0
    %142 = vperm.xlu0 %141, %v35
    %v143 = vpop.permute.xlu0 %142
    %146 = vset.pattern.permute.xlu0 0
    %147 = vperm.xlu0 %146, %v36
    %v148 = vpop.permute.xlu0 %147
    %151 = vset.pattern.permute.xlu0 0
    %152 = vperm.xlu0 %151, %v37
    %v153 = vpop.permute.xlu0 %152
    %156 = vset.pattern.permute.xlu0 0
    %157 = vperm.xlu0 %156, %v38
    %v158 = vpop.permute.xlu0 %157
    %161 = vset.pattern.permute.xlu0 0
    %162 = vperm.xlu0 %161, %v39
    %v163 = vpop.permute.xlu0 %162
    %166 = vset.pattern.permute.xlu0 0
    %167 = vperm.xlu0 %166, %v40
    %v168 = vpop.permute.xlu0 %167
    %171 = vset.pattern.permute.xlu0 0
    %172 = vperm.xlu0 %171, %v41
    %v173 = vpop.permute.xlu0 %172
    %176 = vset.pattern.permute.xlu0 0
    %177 = vperm.xlu0 %176, %v42
    %v178 = vpop.permute.xlu0 %177
    %181 = vset.pattern.permute.xlu0 0
    %182 = vperm.xlu0 %181, %v43
    %v183 = vpop.permute.xlu0 %182
    %186 = vset.pattern.permute.xlu0 0
    %187 = vperm.xlu0 %186, %v44
    %v188 = vpop.permute.xlu0 %187
    %191 = vset.pattern.permute.xlu0 0
    %192 = vperm.xlu0 %191, %v45
    %v193 = vpop.permute.xlu0 %192
    %196 = vset.pattern.permute.xlu0 0
    %197 = vperm.xlu0 %196, %v46
    %v198 = vpop.permute.xlu0 %197
    %201 = vset.pattern.permute.xlu0 0
    %202 = vperm.xlu0 %201, %v47
    %v203 = vpop.permute.xlu0 %202
    %206 = vset.pattern.permute.xlu0 0
    %207 = vperm.xlu0 %206, %v48
    %v208 = vpop.permute.xlu0 %207
    %211 = vset.pattern.permute.xlu0 0
    %212 = vperm.xlu0 %211, %v49
    %v213 = vpop.permute.xlu0 %212
    %216 = vset.pattern.permute.xlu0 0
    %217 = vperm.xlu0 %216, %v50
    %v218 = vpop.permute.xlu0 %217
    %221 = vset.pattern.permute.xlu0 0
    %222 = vperm.xlu0 %221, %v51
    %v223 = vpop.permute.xlu0 %222
    %226 = vset.pattern.permute.xlu0 0
    %227 = vperm.xlu0 %226, %v52
    %v228 = vpop.permute.xlu0 %227
    %231 = vset.pattern.permute.xlu0 0
    %232 = vperm.xlu0 %231, %v53
    %v233 = vpop.permute.xlu0 %232
    %236 = vset.pattern.permute.xlu0 0
    %237 = vperm.xlu0 %236, %v54
    %v238 = vpop.permute.xlu0 %237
    %241 = vset.pattern.permute.xlu0 0
    %242 = vperm.xlu0 %241, %v55
    %v243 = vpop.permute.xlu0 %242
    %246 = vset.pattern.permute.xlu0 0
    %247 = vperm.xlu0 %246, %v56
    %v248 = vpop.permute.xlu0 %247
    %251 = vset.pattern.permute.xlu0 0
    %252 = vperm.xlu0 %251, %v57
    %v253 = vpop.permute.xlu0 %252
    %256 = vset.pattern.permute.xlu0 0
    %257 = vperm.xlu0 %256, %v58
    %v258 = vpop.permute.xlu0 %257
    %261 = vset.pattern.permute.xlu0 0
    %262 = vperm.xlu0 %261, %v59
    %v263 = vpop.permute.xlu0 %262
    %266 = vset.pattern.permute.xlu0 0
    %267 = vperm.xlu0 %266, %v60
    %v268 = vpop.permute.xlu0 %267
    %271 = vset.pattern.permute.xlu0 0
    %272 = vperm.xlu0 %271, %v61
    %v273 = vpop.permute.xlu0 %272
    %276 = vset.pattern.permute.xlu0 0
    %277 = vperm.xlu0 %276, %v62
    %v278 = vpop.permute.xlu0 %277
    %281 = vset.pattern.permute.xlu0 0
    %282 = vperm.xlu0 %281, %v63
    %v283 = vpop.permute.xlu0 %282
    %286 = vset.pattern.permute.xlu0 0
    %287 = vperm.xlu0 %286, %v64
    %v288 = vpop.permute.xlu0 %287
    %291 = vset.pattern.permute.xlu0 0
    %292 = vperm.xlu0 %291, %v65
    %v293 = vpop.permute.xlu0 %292
    %296 = vset.pattern.permute.xlu0 0
    %297 = vperm.xlu0 %296, %v66
    %v298 = vpop.permute.xlu0 %297
    %301 = vset.pattern.permute.xlu0 0
    %302 = vperm.xlu0 %301, %v67
    %v303 = vpop.permute.xlu0 %302
    %306 = vset.pattern.permute.xlu0 0
    %307 = vperm.xlu0 %306, %v68
    %v308 = vpop.permute.xlu0 %307
    %v311 = vlaneseq
    %v312 = vshrl.u32 %v311, 7
    %v313 = vsub.s32 0, %v312
    %v314 = vrot.slane %v69, %v313
    %v315 = vlaneseq
    %v316 = vshrl.u32 %v315, 7
    %v317 = vsub.s32 1, %v316
    %v318 = vrot.slane %v69, %v317
    %v321 = vmul.f32 %v73, %v314
    %v322 = vmul.f32 %v73, %v318
    %v323 = vmul.f32 %v78, %v314
    %v324 = vmul.f32 %v78, %v318
    %v325 = vmul.f32 %v83, %v314
    %v326 = vmul.f32 %v83, %v318
    %v327 = vmul.f32 %v88, %v314
    %v328 = vmul.f32 %v88, %v318
    %v329 = vmul.f32 %v93, %v314
    %v330 = vmul.f32 %v93, %v318
    %v331 = vmul.f32 %v98, %v314
    %v332 = vmul.f32 %v98, %v318
    %v333 = vmul.f32 %v103, %v314
    %v334 = vmul.f32 %v103, %v318
    %v335 = vmul.f32 %v108, %v314
    %v336 = vmul.f32 %v108, %v318
    %v337 = vmul.f32 %v113, %v314
    %v338 = vmul.f32 %v113, %v318
    %v339 = vmul.f32 %v118, %v314
    %v340 = vmul.f32 %v118, %v318
    %v341 = vmul.f32 %v123, %v314
    %v342 = vmul.f32 %v123, %v318
    %v343 = vmul.f32 %v128, %v314
    %v344 = vmul.f32 %v128, %v318
    %v345 = vmul.f32 %v133, %v314
    %v346 = vmul.f32 %v133, %v318
    %v347 = vmul.f32 %v138, %v314
    %v348 = vmul.f32 %v138, %v318
    %v349 = vmul.f32 %v143, %v314
    %v350 = vmul.f32 %v143, %v318
    %v351 = vmul.f32 %v148, %v314
    %v352 = vmul.f32 %v148, %v318
    %v353 = vmul.f32 %v153, %v314
    %v354 = vmul.f32 %v153, %v318
    %v355 = vmul.f32 %v158, %v314
    %v356 = vmul.f32 %v158, %v318
    %v357 = vmul.f32 %v163, %v314
    %v358 = vmul.f32 %v163, %v318
    %v359 = vmul.f32 %v168, %v314
    %v360 = vmul.f32 %v168, %v318
    %v361 = vmul.f32 %v173, %v314
    %v362 = vmul.f32 %v173, %v318
    %v363 = vmul.f32 %v178, %v314
    %v364 = vmul.f32 %v178, %v318
    %v365 = vmul.f32 %v183, %v314
    %v366 = vmul.f32 %v183, %v318
    %v367 = vmul.f32 %v188, %v314
    %v368 = vmul.f32 %v188, %v318
    %v369 = vmul.f32 %v193, %v314
    %v370 = vmul.f32 %v193, %v318
    %v371 = vmul.f32 %v198, %v314
    %v372 = vmul.f32 %v198, %v318
    %v373 = vmul.f32 %v203, %v314
    %v374 = vmul.f32 %v203, %v318
    %v375 = vmul.f32 %v208, %v314
    %v376 = vmul.f32 %v208, %v318
    %v377 = vmul.f32 %v213, %v314
    %v378 = vmul.f32 %v213, %v318
    %v379 = vmul.f32 %v218, %v314
    %v380 = vmul.f32 %v218, %v318
    %v381 = vmul.f32 %v223, %v314
    %v382 = vmul.f32 %v223, %v318
    %v383 = vmul.f32 %v228, %v314
    %v384 = vmul.f32 %v228, %v318
    %v385 = vmul.f32 %v233, %v314
    %v386 = vmul.f32 %v233, %v318
    %v387 = vmul.f32 %v238, %v314
    %v388 = vmul.f32 %v238, %v318
    %v389 = vmul.f32 %v243, %v314
    %v390 = vmul.f32 %v243, %v318
    %v391 = vmul.f32 %v248, %v314
    %v392 = vmul.f32 %v248, %v318
    %v393 = vmul.f32 %v253, %v314
    %v394 = vmul.f32 %v253, %v318
    %v395 = vmul.f32 %v258, %v314
    %v396 = vmul.f32 %v258, %v318
    %v397 = vmul.f32 %v263, %v314
    %v398 = vmul.f32 %v263, %v318
    %v399 = vmul.f32 %v268, %v314
    %v400 = vmul.f32 %v268, %v318
    %v401 = vmul.f32 %v273, %v314
    %v402 = vmul.f32 %v273, %v318
    %v403 = vmul.f32 %v278, %v314
    %v404 = vmul.f32 %v278, %v318
    %v405 = vmul.f32 %v283, %v314
    %v406 = vmul.f32 %v283, %v318
    %v407 = vmul.f32 %v288, %v314
    %v408 = vmul.f32 %v288, %v318
    %v409 = vmul.f32 %v293, %v314
    %v410 = vmul.f32 %v293, %v318
    %v411 = vmul.f32 %v298, %v314
    %v412 = vmul.f32 %v298, %v318
    %v413 = vmul.f32 %v303, %v314
    %v414 = vmul.f32 %v303, %v318
    %v415 = vmul.f32 %v308, %v314
    %v416 = vmul.f32 %v308, %v318
    %s417 = scalar_lea.vmem %s0, 1
    %v418 = vld [vmem:[%s417] ss:$2 sm:$0x3]
    %419 = vset.pattern.permute.xlu0 1
    %420 = vperm.xlu0 %419, %v21
    %v421 = vpop.permute.xlu0 %420
    %423 = vset.pattern.permute.xlu0 1
    %424 = vperm.xlu0 %423, %v22
    %v425 = vpop.permute.xlu0 %424
    %427 = vset.pattern.permute.xlu0 1
    %428 = vperm.xlu0 %427, %v23
    %v429 = vpop.permute.xlu0 %428
    %431 = vset.pattern.permute.xlu0 1
    %432 = vperm.xlu0 %431, %v24
    %v433 = vpop.permute.xlu0 %432
    %435 = vset.pattern.permute.xlu0 1
    %436 = vperm.xlu0 %435, %v25
    %v437 = vpop.permute.xlu0 %436
    %439 = vset.pattern.permute.xlu0 1
    %440 = vperm.xlu0 %439, %v26
    %v441 = vpop.permute.xlu0 %440
    %443 = vset.pattern.permute.xlu0 1
    %444 = vperm.xlu0 %443, %v27
    %v445 = vpop.permute.xlu0 %444
    %447 = vset.pattern.permute.xlu0 1
    %448 = vperm.xlu0 %447, %v28
    %v449 = vpop.permute.xlu0 %448
    %451 = vset.pattern.permute.xlu0 1
    %452 = vperm.xlu0 %451, %v29
    %v453 = vpop.permute.xlu0 %452
    %455 = vset.pattern.permute.xlu0 1
    %456 = vperm.xlu0 %455, %v30
    %v457 = vpop.permute.xlu0 %456
    %459 = vset.pattern.permute.xlu0 1
    %460 = vperm.xlu0 %459, %v31
    %v461 = vpop.permute.xlu0 %460
    %463 = vset.pattern.permute.xlu0 1
    %464 = vperm.xlu0 %463, %v32
    %v465 = vpop.permute.xlu0 %464
    %467 = vset.pattern.permute.xlu0 1
    %468 = vperm.xlu0 %467, %v33
    %v469 = vpop.permute.xlu0 %468
    %471 = vset.pattern.permute.xlu0 1
    %472 = vperm.xlu0 %471, %v34
    %v473 = vpop.permute.xlu0 %472
    %475 = vset.pattern.permute.xlu0 1
    %476 = vperm.xlu0 %475, %v35
    %v477 = vpop.permute.xlu0 %476
    %479 = vset.pattern.permute.xlu0 1
    %480 = vperm.xlu0 %479, %v36
    %v481 = vpop.permute.xlu0 %480
    %483 = vset.pattern.permute.xlu0 1
    %484 = vperm.xlu0 %483, %v37
    %v485 = vpop.permute.xlu0 %484
    %487 = vset.pattern.permute.xlu0 1
    %488 = vperm.xlu0 %487, %v38
    %v489 = vpop.permute.xlu0 %488
    %491 = vset.pattern.permute.xlu0 1
    %492 = vperm.xlu0 %491, %v39
    %v493 = vpop.permute.xlu0 %492
    %495 = vset.pattern.permute.xlu0 1
    %496 = vperm.xlu0 %495, %v40
    %v497 = vpop.permute.xlu0 %496
    %499 = vset.pattern.permute.xlu0 1
    %500 = vperm.xlu0 %499, %v41
    %v501 = vpop.permute.xlu0 %500
    %503 = vset.pattern.permute.xlu0 1
    %504 = vperm.xlu0 %503, %v42
    %v505 = vpop.permute.xlu0 %504
    %507 = vset.pattern.permute.xlu0 1
    %508 = vperm.xlu0 %507, %v43
    %v509 = vpop.permute.xlu0 %508
    %511 = vset.pattern.permute.xlu0 1
    %512 = vperm.xlu0 %511, %v44
    %v513 = vpop.permute.xlu0 %512
    %515 = vset.pattern.permute.xlu0 1
    %516 = vperm.xlu0 %515, %v45
    %v517 = vpop.permute.xlu0 %516
    %519 = vset.pattern.permute.xlu0 1
    %520 = vperm.xlu0 %519, %v46
    %v521 = vpop.permute.xlu0 %520
    %523 = vset.pattern.permute.xlu0 1
    %524 = vperm.xlu0 %523, %v47
    %v525 = vpop.permute.xlu0 %524
    %527 = vset.pattern.permute.xlu0 1
    %528 = vperm.xlu0 %527, %v48
    %v529 = vpop.permute.xlu0 %528
    %531 = vset.pattern.permute.xlu0 1
    %532 = vperm.xlu0 %531, %v49
    %v533 = vpop.permute.xlu0 %532
    %535 = vset.pattern.permute.xlu0 1
    %536 = vperm.xlu0 %535, %v50
    %v537 = vpop.permute.xlu0 %536
    %539 = vset.pattern.permute.xlu0 1
    %540 = vperm.xlu0 %539, %v51
    %v541 = vpop.permute.xlu0 %540
    %543 = vset.pattern.permute.xlu0 1
    %544 = vperm.xlu0 %543, %v52
    %v545 = vpop.permute.xlu0 %544
    %547 = vset.pattern.permute.xlu0 1
    %548 = vperm.xlu0 %547, %v53
    %v549 = vpop.permute.xlu0 %548
    %551 = vset.pattern.permute.xlu0 1
    %552 = vperm.xlu0 %551, %v54
    %v553 = vpop.permute.xlu0 %552
    %555 = vset.pattern.permute.xlu0 1
    %556 = vperm.xlu0 %555, %v55
    %v557 = vpop.permute.xlu0 %556
    %559 = vset.pattern.permute.xlu0 1
    %560 = vperm.xlu0 %559, %v56
    %v561 = vpop.permute.xlu0 %560
    %563 = vset.pattern.permute.xlu0 1
    %564 = vperm.xlu0 %563, %v57
    %v565 = vpop.permute.xlu0 %564
    %567 = vset.pattern.permute.xlu0 1
    %568 = vperm.xlu0 %567, %v58
    %v569 = vpop.permute.xlu0 %568
    %571 = vset.pattern.permute.xlu0 1
    %572 = vperm.xlu0 %571, %v59
    %v573 = vpop.permute.xlu0 %572
    %575 = vset.pattern.permute.xlu0 1
    %576 = vperm.xlu0 %575, %v60
    %v577 = vpop.permute.xlu0 %576
    %579 = vset.pattern.permute.xlu0 1
    %580 = vperm.xlu0 %579, %v61
    %v581 = vpop.permute.xlu0 %580
    %583 = vset.pattern.permute.xlu0 1
    %584 = vperm.xlu0 %583, %v62
    %v585 = vpop.permute.xlu0 %584
    %587 = vset.pattern.permute.xlu0 1
    %588 = vperm.xlu0 %587, %v63
    %v589 = vpop.permute.xlu0 %588
    %591 = vset.pattern.permute.xlu0 1
    %592 = vperm.xlu0 %591, %v64
    %v593 = vpop.permute.xlu0 %592
    %595 = vset.pattern.permute.xlu0 1
    %596 = vperm.xlu0 %595, %v65
    %v597 = vpop.permute.xlu0 %596
    %599 = vset.pattern.permute.xlu0 1
    %600 = vperm.xlu0 %599, %v66
    %v601 = vpop.permute.xlu0 %600
    %603 = vset.pattern.permute.xlu0 1
    %604 = vperm.xlu0 %603, %v67
    %v605 = vpop.permute.xlu0 %604
    %607 = vset.pattern.permute.xlu0 1
    %608 = vperm.xlu0 %607, %v68
    %v609 = vpop.permute.xlu0 %608
    %v612 = vlaneseq
    %v613 = vshrl.u32 %v612, 7
    %v614 = vsub.s32 0, %v613
    %v615 = vrot.slane %v418, %v614
    %v616 = vlaneseq
    %v617 = vshrl.u32 %v616, 7
    %v618 = vsub.s32 1, %v617
    %v619 = vrot.slane %v418, %v618
    %v622 = vmul.f32 %v421, %v615
    %v623 = vmul.f32 %v421, %v619
    %v624 = vmul.f32 %v425, %v615
    %v625 = vmul.f32 %v425, %v619
    %v626 = vmul.f32 %v429, %v615
    %v627 = vmul.f32 %v429, %v619
    %v628 = vmul.f32 %v433, %v615
    %v629 = vmul.f32 %v433, %v619
    %v630 = vmul.f32 %v437, %v615
    %v631 = vmul.f32 %v437, %v619
    %v632 = vmul.f32 %v441, %v615
    %v633 = vmul.f32 %v441, %v619
    %v634 = vmul.f32 %v445, %v615
    %v635 = vmul.f32 %v445, %v619
    %v636 = vmul.f32 %v449, %v615
    %v637 = vmul.f32 %v449, %v619
    %v638 = vmul.f32 %v453, %v615
    %v639 = vmul.f32 %v453, %v619
    %v640 = vmul.f32 %v457, %v615
    %v641 = vmul.f32 %v457, %v619
    %v642 = vmul.f32 %v461, %v615
    %v643 = vmul.f32 %v461, %v619
    %v644 = vmul.f32 %v465, %v615
    %v645 = vmul.f32 %v465, %v619
    %v646 = vmul.f32 %v469, %v615
    %v647 = vmul.f32 %v469, %v619
    %v648 = vmul.f32 %v473, %v615
    %v649 = vmul.f32 %v473, %v619
    %v650 = vmul.f32 %v477, %v615
    %v651 = vmul.f32 %v477, %v619
    %v652 = vmul.f32 %v481, %v615
    %v653 = vmul.f32 %v481, %v619
    %v654 = vmul.f32 %v485, %v615
    %v655 = vmul.f32 %v485, %v619
    %v656 = vmul.f32 %v489, %v615
    %v657 = vmul.f32 %v489, %v619
    %v658 = vmul.f32 %v493, %v615
    %v659 = vmul.f32 %v493, %v619
    %v660 = vmul.f32 %v497, %v615
    %v661 = vmul.f32 %v497, %v619
    %v662 = vmul.f32 %v501, %v615
    %v663 = vmul.f32 %v501, %v619
    %v664 = vmul.f32 %v505, %v615
    %v665 = vmul.f32 %v505, %v619
    %v666 = vmul.f32 %v509, %v615
    %v667 = vmul.f32 %v509, %v619
    %v668 = vmul.f32 %v513, %v615
    %v669 = vmul.f32 %v513, %v619
    %v670 = vmul.f32 %v517, %v615
    %v671 = vmul.f32 %v517, %v619
    %v672 = vmul.f32 %v521, %v615
    %v673 = vmul.f32 %v521, %v619
    %v674 = vmul.f32 %v525, %v615
    %v675 = vmul.f32 %v525, %v619
    %v676 = vmul.f32 %v529, %v615
    %v677 = vmul.f32 %v529, %v619
    %v678 = vmul.f32 %v533, %v615
    %v679 = vmul.f32 %v533, %v619
    %v680 = vmul.f32 %v537, %v615
    %v681 = vmul.f32 %v537, %v619
    %v682 = vmul.f32 %v541, %v615
    %v683 = vmul.f32 %v541, %v619
    %v684 = vmul.f32 %v545, %v615
    %v685 = vmul.f32 %v545, %v619
    %v686 = vmul.f32 %v549, %v615
    %v687 = vmul.f32 %v549, %v619
    %v688 = vmul.f32 %v553, %v615
    %v689 = vmul.f32 %v553, %v619
    %v690 = vmul.f32 %v557, %v615
    %v691 = vmul.f32 %v557, %v619
    %v692 = vmul.f32 %v561, %v615
    %v693 = vmul.f32 %v561, %v619
    %v694 = vmul.f32 %v565, %v615
    %v695 = vmul.f32 %v565, %v619
    %v696 = vmul.f32 %v569, %v615
    %v697 = vmul.f32 %v569, %v619
    %v698 = vmul.f32 %v573, %v615
    %v699 = vmul.f32 %v573, %v619
    %v700 = vmul.f32 %v577, %v615
    %v701 = vmul.f32 %v577, %v619
    %v702 = vmul.f32 %v581, %v615
    %v703 = vmul.f32 %v581, %v619
    %v704 = vmul.f32 %v585, %v615
    %v705 = vmul.f32 %v585, %v619
    %v706 = vmul.f32 %v589, %v615
    %v707 = vmul.f32 %v589, %v619
    %v708 = vmul.f32 %v593, %v615
    %v709 = vmul.f32 %v593, %v619
    %v710 = vmul.f32 %v597, %v615
    %v711 = vmul.f32 %v597, %v619
    %v712 = vmul.f32 %v601, %v615
    %v713 = vmul.f32 %v601, %v619
    %v714 = vmul.f32 %v605, %v615
    %v715 = vmul.f32 %v605, %v619
    %v716 = vmul.f32 %v609, %v615
    %v717 = vmul.f32 %v609, %v619
    %v718 = vadd.f32 %v321, %v622
    %v719 = vadd.f32 %v322, %v623
    %v720 = vadd.f32 %v323, %v624
    %v721 = vadd.f32 %v324, %v625
    %v722 = vadd.f32 %v325, %v626
    %v723 = vadd.f32 %v326, %v627
    %v724 = vadd.f32 %v327, %v628
    %v725 = vadd.f32 %v328, %v629
    %v726 = vadd.f32 %v329, %v630
    %v727 = vadd.f32 %v330, %v631
    %v728 = vadd.f32 %v331, %v632
    %v729 = vadd.f32 %v332, %v633
    %v730 = vadd.f32 %v333, %v634
    %v731 = vadd.f32 %v334, %v635
    %v732 = vadd.f32 %v335, %v636
    %v733 = vadd.f32 %v336, %v637
    %v734 = vadd.f32 %v337, %v638
    %v735 = vadd.f32 %v338, %v639
    %v736 = vadd.f32 %v339, %v640
    %v737 = vadd.f32 %v340, %v641
    %v738 = vadd.f32 %v341, %v642
    %v739 = vadd.f32 %v342, %v643
    %v740 = vadd.f32 %v343, %v644
    %v741 = vadd.f32 %v344, %v645
    %v742 = vadd.f32 %v345, %v646
    %v743 = vadd.f32 %v346, %v647
    %v744 = vadd.f32 %v347, %v648
    %v745 = vadd.f32 %v348, %v649
    %v746 = vadd.f32 %v349, %v650
    %v747 = vadd.f32 %v350, %v651
    %v748 = vadd.f32 %v351, %v652
    %v749 = vadd.f32 %v352, %v653
    %v750 = vadd.f32 %v353, %v654
    %v751 = vadd.f32 %v354, %v655
    %v752 = vadd.f32 %v355, %v656
    %v753 = vadd.f32 %v356, %v657
    %v754 = vadd.f32 %v357, %v658
    %v755 = vadd.f32 %v358, %v659
    %v756 = vadd.f32 %v359, %v660
    %v757 = vadd.f32 %v360, %v661
    %v758 = vadd.f32 %v361, %v662
    %v759 = vadd.f32 %v362, %v663
    %v760 = vadd.f32 %v363, %v664
    %v761 = vadd.f32 %v364, %v665
    %v762 = vadd.f32 %v365, %v666
    %v763 = vadd.f32 %v366, %v667
    %v764 = vadd.f32 %v367, %v668
    %v765 = vadd.f32 %v368, %v669
    %v766 = vadd.f32 %v369, %v670
    %v767 = vadd.f32 %v370, %v671
    %v768 = vadd.f32 %v371, %v672
    %v769 = vadd.f32 %v372, %v673
    %v770 = vadd.f32 %v373, %v674
    %v771 = vadd.f32 %v374, %v675
    %v772 = vadd.f32 %v375, %v676
    %v773 = vadd.f32 %v376, %v677
    %v774 = vadd.f32 %v377, %v678
    %v775 = vadd.f32 %v378, %v679
    %v776 = vadd.f32 %v379, %v680
    %v777 = vadd.f32 %v380, %v681
    %v778 = vadd.f32 %v381, %v682
    %v779 = vadd.f32 %v382, %v683
    %v780 = vadd.f32 %v383, %v684
    %v781 = vadd.f32 %v384, %v685
    %v782 = vadd.f32 %v385, %v686
    %v783 = vadd.f32 %v386, %v687
    %v784 = vadd.f32 %v387, %v688
    %v785 = vadd.f32 %v388, %v689
    %v786 = vadd.f32 %v389, %v690
    %v787 = vadd.f32 %v390, %v691
    %v788 = vadd.f32 %v391, %v692
    %v789 = vadd.f32 %v392, %v693
    %v790 = vadd.f32 %v393, %v694
    %v791 = vadd.f32 %v394, %v695
    %v792 = vadd.f32 %v395, %v696
    %v793 = vadd.f32 %v396, %v697
    %v794 = vadd.f32 %v397, %v698
    %v795 = vadd.f32 %v398, %v699
    %v796 = vadd.f32 %v399, %v700
    %v797 = vadd.f32 %v400, %v701
    %v798 = vadd.f32 %v401, %v702
    %v799 = vadd.f32 %v402, %v703
    %v800 = vadd.f32 %v403, %v704
    %v801 = vadd.f32 %v404, %v705
    %v802 = vadd.f32 %v405, %v706
    %v803 = vadd.f32 %v406, %v707
    %v804 = vadd.f32 %v407, %v708
    %v805 = vadd.f32 %v408, %v709
    %v806 = vadd.f32 %v409, %v710
    %v807 = vadd.f32 %v410, %v711
    %v808 = vadd.f32 %v411, %v712
    %v809 = vadd.f32 %v412, %v713
    %v810 = vadd.f32 %v413, %v714
    %v811 = vadd.f32 %v414, %v715
    %v812 = vadd.f32 %v415, %v716
    %v813 = vadd.f32 %v416, %v717
    %v814 = vld [vmem:[%s2] sm:$0xff]
    %v815 = vld [vmem:[%s2 + $0x8] sm:$0xff]
    %v816 = vld [vmem:[%s2 + $0x10] sm:$0xff]
    %v817 = vld [vmem:[%s2 + $0x18] sm:$0xff]
    %v818 = vld [vmem:[%s2 + $0x20] sm:$0xff]
    %v819 = vld [vmem:[%s2 + $0x28] sm:$0xff]
    %v820 = vld [vmem:[%s2 + $0x30] sm:$0xff]
    %v821 = vld [vmem:[%s2 + $0x38] sm:$0xff]
    %v822 = vld [vmem:[%s2 + $0x40] sm:$0xff]
    %v823 = vld [vmem:[%s2 + $0x48] sm:$0xff]
    %v824 = vld [vmem:[%s2 + $0x50] sm:$0xff]
    %v825 = vld [vmem:[%s2 + $0x58] sm:$0xff]
    %v826 = vld [vmem:[%s2 + $0x60] sm:$0xff]
    %v827 = vld [vmem:[%s2 + $0x68] sm:$0xff]
    %v828 = vld [vmem:[%s2 + $0x70] sm:$0xff]
    %v829 = vld [vmem:[%s2 + $0x78] sm:$0xff]
    %v830 = vld [vmem:[%s2 + $0x80] sm:$0xff]
    %v831 = vld [vmem:[%s2 + $0x88] sm:$0xff]
    %v832 = vld [vmem:[%s2 + $0x90] sm:$0xff]
    %v833 = vld [vmem:[%s2 + $0x98] sm:$0xff]
    %v834 = vld [vmem:[%s2 + $0xa0] sm:$0xff]
    %v835 = vld [vmem:[%s2 + $0xa8] sm:$0xff]
    %v836 = vld [vmem:[%s2 + $0xb0] sm:$0xff]
    %v837 = vld [vmem:[%s2 + $0xb8] sm:$0xff]
    %v838 = vld [vmem:[%s2 + $0xc0] sm:$0xff]
    %v839 = vld [vmem:[%s2 + $0xc8] sm:$0xff]
    %v840 = vld [vmem:[%s2 + $0xd0] sm:$0xff]
    %v841 = vld [vmem:[%s2 + $0xd8] sm:$0xff]
    %v842 = vld [vmem:[%s2 + $0xe0] sm:$0xff]
    %v843 = vld [vmem:[%s2 + $0xe8] sm:$0xff]
    %v844 = vld [vmem:[%s2 + $0xf0] sm:$0xff]
    %v845 = vld [vmem:[%s2 + $0xf8] sm:$0xff]
    %v846 = vld [vmem:[%s2 + $0x100] sm:$0xff]
    %v847 = vld [vmem:[%s2 + $0x108] sm:$0xff]
    %v848 = vld [vmem:[%s2 + $0x110] sm:$0xff]
    %v849 = vld [vmem:[%s2 + $0x118] sm:$0xff]
    %v850 = vld [vmem:[%s2 + $0x120] sm:$0xff]
    %v851 = vld [vmem:[%s2 + $0x128] sm:$0xff]
    %v852 = vld [vmem:[%s2 + $0x130] sm:$0xff]
    %v853 = vld [vmem:[%s2 + $0x138] sm:$0xff]
    %v854 = vld [vmem:[%s2 + $0x140] sm:$0xff]
    %v855 = vld [vmem:[%s2 + $0x148] sm:$0xff]
    %v856 = vld [vmem:[%s2 + $0x150] sm:$0xff]
    %v857 = vld [vmem:[%s2 + $0x158] sm:$0xff]
    %v858 = vld [vmem:[%s2 + $0x160] sm:$0xff]
    %v859 = vld [vmem:[%s2 + $0x168] sm:$0xff]
    %v860 = vld [vmem:[%s2 + $0x170] sm:$0xff]
    %v861 = vld [vmem:[%s2 + $0x178] sm:$0xff]
    %863 = vset.pattern.permute.xlu0 0
    %864 = vperm.xlu0 %863, %v814
    %v865 = vpop.permute.xlu0 %864
    %868 = vset.pattern.permute.xlu0 0
    %869 = vperm.xlu0 %868, %v815
    %v870 = vpop.permute.xlu0 %869
    %873 = vset.pattern.permute.xlu0 0
    %874 = vperm.xlu0 %873, %v816
    %v875 = vpop.permute.xlu0 %874
    %878 = vset.pattern.permute.xlu0 0
    %879 = vperm.xlu0 %878, %v817
    %v880 = vpop.permute.xlu0 %879
    %883 = vset.pattern.permute.xlu0 0
    %884 = vperm.xlu0 %883, %v818
    %v885 = vpop.permute.xlu0 %884
    %888 = vset.pattern.permute.xlu0 0
    %889 = vperm.xlu0 %888, %v819
    %v890 = vpop.permute.xlu0 %889
    %893 = vset.pattern.permute.xlu0 0
    %894 = vperm.xlu0 %893, %v820
    %v895 = vpop.permute.xlu0 %894
    %898 = vset.pattern.permute.xlu0 0
    %899 = vperm.xlu0 %898, %v821
    %v900 = vpop.permute.xlu0 %899
    %903 = vset.pattern.permute.xlu0 0
    %904 = vperm.xlu0 %903, %v822
    %v905 = vpop.permute.xlu0 %904
    %908 = vset.pattern.permute.xlu0 0
    %909 = vperm.xlu0 %908, %v823
    %v910 = vpop.permute.xlu0 %909
    %913 = vset.pattern.permute.xlu0 0
    %914 = vperm.xlu0 %913, %v824
    %v915 = vpop.permute.xlu0 %914
    %918 = vset.pattern.permute.xlu0 0
    %919 = vperm.xlu0 %918, %v825
    %v920 = vpop.permute.xlu0 %919
    %923 = vset.pattern.permute.xlu0 0
    %924 = vperm.xlu0 %923, %v826
    %v925 = vpop.permute.xlu0 %924
    %928 = vset.pattern.permute.xlu0 0
    %929 = vperm.xlu0 %928, %v827
    %v930 = vpop.permute.xlu0 %929
    %933 = vset.pattern.permute.xlu0 0
    %934 = vperm.xlu0 %933, %v828
    %v935 = vpop.permute.xlu0 %934
    %938 = vset.pattern.permute.xlu0 0
    %939 = vperm.xlu0 %938, %v829
    %v940 = vpop.permute.xlu0 %939
    %943 = vset.pattern.permute.xlu0 0
    %944 = vperm.xlu0 %943, %v830
    %v945 = vpop.permute.xlu0 %944
    %948 = vset.pattern.permute.xlu0 0
    %949 = vperm.xlu0 %948, %v831
    %v950 = vpop.permute.xlu0 %949
    %953 = vset.pattern.permute.xlu0 0
    %954 = vperm.xlu0 %953, %v832
    %v955 = vpop.permute.xlu0 %954
    %958 = vset.pattern.permute.xlu0 0
    %959 = vperm.xlu0 %958, %v833
    %v960 = vpop.permute.xlu0 %959
    %963 = vset.pattern.permute.xlu0 0
    %964 = vperm.xlu0 %963, %v834
    %v965 = vpop.permute.xlu0 %964
    %968 = vset.pattern.permute.xlu0 0
    %969 = vperm.xlu0 %968, %v835
    %v970 = vpop.permute.xlu0 %969
    %973 = vset.pattern.permute.xlu0 0
    %974 = vperm.xlu0 %973, %v836
    %v975 = vpop.permute.xlu0 %974
    %978 = vset.pattern.permute.xlu0 0
    %979 = vperm.xlu0 %978, %v837
    %v980 = vpop.permute.xlu0 %979
    %983 = vset.pattern.permute.xlu0 0
    %984 = vperm.xlu0 %983, %v838
    %v985 = vpop.permute.xlu0 %984
    %988 = vset.pattern.permute.xlu0 0
    %989 = vperm.xlu0 %988, %v839
    %v990 = vpop.permute.xlu0 %989
    %993 = vset.pattern.permute.xlu0 0
    %994 = vperm.xlu0 %993, %v840
    %v995 = vpop.permute.xlu0 %994
    %998 = vset.pattern.permute.xlu0 0
    %999 = vperm.xlu0 %998, %v841
    %v1000 = vpop.permute.xlu0 %999
    %1003 = vset.pattern.permute.xlu0 0
    %1004 = vperm.xlu0 %1003, %v842
    %v1005 = vpop.permute.xlu0 %1004
    %1008 = vset.pattern.permute.xlu0 0
    %1009 = vperm.xlu0 %1008, %v843
    %v1010 = vpop.permute.xlu0 %1009
    %1013 = vset.pattern.permute.xlu0 0
    %1014 = vperm.xlu0 %1013, %v844
    %v1015 = vpop.permute.xlu0 %1014
    %1018 = vset.pattern.permute.xlu0 0
    %1019 = vperm.xlu0 %1018, %v845
    %v1020 = vpop.permute.xlu0 %1019
    %1023 = vset.pattern.permute.xlu0 0
    %1024 = vperm.xlu0 %1023, %v846
    %v1025 = vpop.permute.xlu0 %1024
    %1028 = vset.pattern.permute.xlu0 0
    %1029 = vperm.xlu0 %1028, %v847
    %v1030 = vpop.permute.xlu0 %1029
    %1033 = vset.pattern.permute.xlu0 0
    %1034 = vperm.xlu0 %1033, %v848
    %v1035 = vpop.permute.xlu0 %1034
    %1038 = vset.pattern.permute.xlu0 0
    %1039 = vperm.xlu0 %1038, %v849
    %v1040 = vpop.permute.xlu0 %1039
    %1043 = vset.pattern.permute.xlu0 0
    %1044 = vperm.xlu0 %1043, %v850
    %v1045 = vpop.permute.xlu0 %1044
    %1048 = vset.pattern.permute.xlu0 0
    %1049 = vperm.xlu0 %1048, %v851
    %v1050 = vpop.permute.xlu0 %1049
    %1053 = vset.pattern.permute.xlu0 0
    %1054 = vperm.xlu0 %1053, %v852
    %v1055 = vpop.permute.xlu0 %1054
    %1058 = vset.pattern.permute.xlu0 0
    %1059 = vperm.xlu0 %1058, %v853
    %v1060 = vpop.permute.xlu0 %1059
    %1063 = vset.pattern.permute.xlu0 0
    %1064 = vperm.xlu0 %1063, %v854
    %v1065 = vpop.permute.xlu0 %1064
    %1068 = vset.pattern.permute.xlu0 0
    %1069 = vperm.xlu0 %1068, %v855
    %v1070 = vpop.permute.xlu0 %1069
    %1073 = vset.pattern.permute.xlu0 0
    %1074 = vperm.xlu0 %1073, %v856
    %v1075 = vpop.permute.xlu0 %1074
    %1078 = vset.pattern.permute.xlu0 0
    %1079 = vperm.xlu0 %1078, %v857
    %v1080 = vpop.permute.xlu0 %1079
    %1083 = vset.pattern.permute.xlu0 0
    %1084 = vperm.xlu0 %1083, %v858
    %v1085 = vpop.permute.xlu0 %1084
    %1088 = vset.pattern.permute.xlu0 0
    %1089 = vperm.xlu0 %1088, %v859
    %v1090 = vpop.permute.xlu0 %1089
    %1093 = vset.pattern.permute.xlu0 0
    %1094 = vperm.xlu0 %1093, %v860
    %v1095 = vpop.permute.xlu0 %1094
    %1098 = vset.pattern.permute.xlu0 0
    %1099 = vperm.xlu0 %1098, %v861
    %v1100 = vpop.permute.xlu0 %1099
    %v1102 = vadd.f32 %v718, %v865
    %v1103 = vadd.f32 %v719, %v865
    %v1104 = vadd.f32 %v720, %v870
    %v1105 = vadd.f32 %v721, %v870
    %v1106 = vadd.f32 %v722, %v875
    %v1107 = vadd.f32 %v723, %v875
    %v1108 = vadd.f32 %v724, %v880
    %v1109 = vadd.f32 %v725, %v880
    %v1110 = vadd.f32 %v726, %v885
    %v1111 = vadd.f32 %v727, %v885
    %v1112 = vadd.f32 %v728, %v890
    %v1113 = vadd.f32 %v729, %v890
    %v1114 = vadd.f32 %v730, %v895
    %v1115 = vadd.f32 %v731, %v895
    %v1116 = vadd.f32 %v732, %v900
    %v1117 = vadd.f32 %v733, %v900
    %v1118 = vadd.f32 %v734, %v905
    %v1119 = vadd.f32 %v735, %v905
    %v1120 = vadd.f32 %v736, %v910
    %v1121 = vadd.f32 %v737, %v910
    %v1122 = vadd.f32 %v738, %v915
    %v1123 = vadd.f32 %v739, %v915
    %v1124 = vadd.f32 %v740, %v920
    %v1125 = vadd.f32 %v741, %v920
    %v1126 = vadd.f32 %v742, %v925
    %v1127 = vadd.f32 %v743, %v925
    %v1128 = vadd.f32 %v744, %v930
    %v1129 = vadd.f32 %v745, %v930
    %v1130 = vadd.f32 %v746, %v935
    %v1131 = vadd.f32 %v747, %v935
    %v1132 = vadd.f32 %v748, %v940
    %v1133 = vadd.f32 %v749, %v940
    %v1134 = vadd.f32 %v750, %v945
    %v1135 = vadd.f32 %v751, %v945
    %v1136 = vadd.f32 %v752, %v950
    %v1137 = vadd.f32 %v753, %v950
    %v1138 = vadd.f32 %v754, %v955
    %v1139 = vadd.f32 %v755, %v955
    %v1140 = vadd.f32 %v756, %v960
    %v1141 = vadd.f32 %v757, %v960
    %v1142 = vadd.f32 %v758, %v965
    %v1143 = vadd.f32 %v759, %v965
    %v1144 = vadd.f32 %v760, %v970
    %v1145 = vadd.f32 %v761, %v970
    %v1146 = vadd.f32 %v762, %v975
    %v1147 = vadd.f32 %v763, %v975
    %v1148 = vadd.f32 %v764, %v980
    %v1149 = vadd.f32 %v765, %v980
    %v1150 = vadd.f32 %v766, %v985
    %v1151 = vadd.f32 %v767, %v985
    %v1152 = vadd.f32 %v768, %v990
    %v1153 = vadd.f32 %v769, %v990
    %v1154 = vadd.f32 %v770, %v995
    %v1155 = vadd.f32 %v771, %v995
    %v1156 = vadd.f32 %v772, %v1000
    %v1157 = vadd.f32 %v773, %v1000
    %v1158 = vadd.f32 %v774, %v1005
    %v1159 = vadd.f32 %v775, %v1005
    %v1160 = vadd.f32 %v776, %v1010
    %v1161 = vadd.f32 %v777, %v1010
    %v1162 = vadd.f32 %v778, %v1015
    %v1163 = vadd.f32 %v779, %v1015
    %v1164 = vadd.f32 %v780, %v1020
    %v1165 = vadd.f32 %v781, %v1020
    %v1166 = vadd.f32 %v782, %v1025
    %v1167 = vadd.f32 %v783, %v1025
    %v1168 = vadd.f32 %v784, %v1030
    %v1169 = vadd.f32 %v785, %v1030
    %v1170 = vadd.f32 %v786, %v1035
    %v1171 = vadd.f32 %v787, %v1035
    %v1172 = vadd.f32 %v788, %v1040
    %v1173 = vadd.f32 %v789, %v1040
    %v1174 = vadd.f32 %v790, %v1045
    %v1175 = vadd.f32 %v791, %v1045
    %v1176 = vadd.f32 %v792, %v1050
    %v1177 = vadd.f32 %v793, %v1050
    %v1178 = vadd.f32 %v794, %v1055
    %v1179 = vadd.f32 %v795, %v1055
    %v1180 = vadd.f32 %v796, %v1060
    %v1181 = vadd.f32 %v797, %v1060
    %v1182 = vadd.f32 %v798, %v1065
    %v1183 = vadd.f32 %v799, %v1065
    %v1184 = vadd.f32 %v800, %v1070
    %v1185 = vadd.f32 %v801, %v1070
    %v1186 = vadd.f32 %v802, %v1075
    %v1187 = vadd.f32 %v803, %v1075
    %v1188 = vadd.f32 %v804, %v1080
    %v1189 = vadd.f32 %v805, %v1080
    %v1190 = vadd.f32 %v806, %v1085
    %v1191 = vadd.f32 %v807, %v1085
    %v1192 = vadd.f32 %v808, %v1090
    %v1193 = vadd.f32 %v809, %v1090
    %v1194 = vadd.f32 %v810, %v1095
    %v1195 = vadd.f32 %v811, %v1095
    %v1196 = vadd.f32 %v812, %v1100
    %v1197 = vadd.f32 %v813, %v1100
    %v1198 = vmax.f32 %v1102, 0.0
    %v1199 = vmax.f32 %v1103, 0.0
    %v1200 = vmax.f32 %v1104, 0.0
    %v1201 = vmax.f32 %v1105, 0.0
    %v1202 = vmax.f32 %v1106, 0.0
    %v1203 = vmax.f32 %v1107, 0.0
    %v1204 = vmax.f32 %v1108, 0.0
    %v1205 = vmax.f32 %v1109, 0.0
    %v1206 = vmax.f32 %v1110, 0.0
    %v1207 = vmax.f32 %v1111, 0.0
    %v1208 = vmax.f32 %v1112, 0.0
    %v1209 = vmax.f32 %v1113, 0.0
    %v1210 = vmax.f32 %v1114, 0.0
    %v1211 = vmax.f32 %v1115, 0.0
    %v1212 = vmax.f32 %v1116, 0.0
    %v1213 = vmax.f32 %v1117, 0.0
    %v1214 = vmax.f32 %v1118, 0.0
    %v1215 = vmax.f32 %v1119, 0.0
    %v1216 = vmax.f32 %v1120, 0.0
    %v1217 = vmax.f32 %v1121, 0.0
    %v1218 = vmax.f32 %v1122, 0.0
    %v1219 = vmax.f32 %v1123, 0.0
    %v1220 = vmax.f32 %v1124, 0.0
    %v1221 = vmax.f32 %v1125, 0.0
    %v1222 = vmax.f32 %v1126, 0.0
    %v1223 = vmax.f32 %v1127, 0.0
    %v1224 = vmax.f32 %v1128, 0.0
    %v1225 = vmax.f32 %v1129, 0.0
    %v1226 = vmax.f32 %v1130, 0.0
    %v1227 = vmax.f32 %v1131, 0.0
    %v1228 = vmax.f32 %v1132, 0.0
    %v1229 = vmax.f32 %v1133, 0.0
    %v1230 = vmax.f32 %v1134, 0.0
    %v1231 = vmax.f32 %v1135, 0.0
    %v1232 = vmax.f32 %v1136, 0.0
    %v1233 = vmax.f32 %v1137, 0.0
    %v1234 = vmax.f32 %v1138, 0.0
    %v1235 = vmax.f32 %v1139, 0.0
    %v1236 = vmax.f32 %v1140, 0.0
    %v1237 = vmax.f32 %v1141, 0.0
    %v1238 = vmax.f32 %v1142, 0.0
    %v1239 = vmax.f32 %v1143, 0.0
    %v1240 = vmax.f32 %v1144, 0.0
    %v1241 = vmax.f32 %v1145, 0.0
    %v1242 = vmax.f32 %v1146, 0.0
    %v1243 = vmax.f32 %v1147, 0.0
    %v1244 = vmax.f32 %v1148, 0.0
    %v1245 = vmax.f32 %v1149, 0.0
    %v1246 = vmax.f32 %v1150, 0.0
    %v1247 = vmax.f32 %v1151, 0.0
    %v1248 = vmax.f32 %v1152, 0.0
    %v1249 = vmax.f32 %v1153, 0.0
    %v1250 = vmax.f32 %v1154, 0.0
    %v1251 = vmax.f32 %v1155, 0.0
    %v1252 = vmax.f32 %v1156, 0.0
    %v1253 = vmax.f32 %v1157, 0.0
    %v1254 = vmax.f32 %v1158, 0.0
    %v1255 = vmax.f32 %v1159, 0.0
    %v1256 = vmax.f32 %v1160, 0.0
    %v1257 = vmax.f32 %v1161, 0.0
    %v1258 = vmax.f32 %v1162, 0.0
    %v1259 = vmax.f32 %v1163, 0.0
    %v1260 = vmax.f32 %v1164, 0.0
    %v1261 = vmax.f32 %v1165, 0.0
    %v1262 = vmax.f32 %v1166, 0.0
    %v1263 = vmax.f32 %v1167, 0.0
    %v1264 = vmax.f32 %v1168, 0.0
    %v1265 = vmax.f32 %v1169, 0.0
    %v1266 = vmax.f32 %v1170, 0.0
    %v1267 = vmax.f32 %v1171, 0.0
    %v1268 = vmax.f32 %v1172, 0.0
    %v1269 = vmax.f32 %v1173, 0.0
    %v1270 = vmax.f32 %v1174, 0.0
    %v1271 = vmax.f32 %v1175, 0.0
    %v1272 = vmax.f32 %v1176, 0.0
    %v1273 = vmax.f32 %v1177, 0.0
    %v1274 = vmax.f32 %v1178, 0.0
    %v1275 = vmax.f32 %v1179, 0.0
    %v1276 = vmax.f32 %v1180, 0.0
    %v1277 = vmax.f32 %v1181, 0.0
    %v1278 = vmax.f32 %v1182, 0.0
    %v1279 = vmax.f32 %v1183, 0.0
    %v1280 = vmax.f32 %v1184, 0.0
    %v1281 = vmax.f32 %v1185, 0.0
    %v1282 = vmax.f32 %v1186, 0.0
    %v1283 = vmax.f32 %v1187, 0.0
    %v1284 = vmax.f32 %v1188, 0.0
    %v1285 = vmax.f32 %v1189, 0.0
    %v1286 = vmax.f32 %v1190, 0.0
    %v1287 = vmax.f32 %v1191, 0.0
    %v1288 = vmax.f32 %v1192, 0.0
    %v1289 = vmax.f32 %v1193, 0.0
    %v1290 = vmax.f32 %v1194, 0.0
    %v1291 = vmax.f32 %v1195, 0.0
    %v1292 = vmax.f32 %v1196, 0.0
    %v1293 = vmax.f32 %v1197, 0.0
    %v1294 = vld [vmem:[%s3] sm:$0xff]
    %v1295 = vld [vmem:[%s3 + $0x8] sm:$0xf]
    %v1296 = vld [vmem:[%s4] sm:$0xf]
    %1298 = vset.pattern.permute.xlu0 0
    %1299 = vperm.xlu0 %1298, %v1296
    %v1300 = vpop.permute.xlu0 %1299
    %v1303 = vcombine.high %v1294, %v1294
    %1305 = vmatprep.subr.mxu0 %v1199
    %1306 = vmatpush1.msra.mxu0 %v1198
    %1307 = vmatprep.subr.mxu0 %v1201
    %1308 = vmatpush1.msra.mxu0 %v1200
    %1309 = vmatprep.subr.mxu0 %v1203
    %1310 = vmatpush1.msra.mxu0 %v1202
    %1311 = vmatprep.subr.mxu0 %v1205
    %1312 = vmatpush1.msra.mxu0 %v1204
    %1313 = vmatprep.subr.mxu0 %v1207
    %1314 = vmatpush1.msra.mxu0 %v1206
    %1315 = vmatprep.subr.mxu0 %v1209
    %1316 = vmatpush1.msra.mxu0 %v1208
    %1317 = vmatprep.subr.mxu0 %v1211
    %1318 = vmatpush1.msra.mxu0 %v1210
    %1319 = vmatprep.subr.mxu0 %v1213
    %1320 = vmatpush1.msra.mxu0 %v1212
    %1321 = vmatprep.subr.mxu0 %v1215
    %1322 = vmatpush1.msra.mxu0 %v1214
    %1323 = vmatprep.subr.mxu0 %v1217
    %1324 = vmatpush1.msra.mxu0 %v1216
    %1325 = vmatprep.subr.mxu0 %v1219
    %1326 = vmatpush1.msra.mxu0 %v1218
    %1327 = vmatprep.subr.mxu0 %v1221
    %1328 = vmatpush1.msra.mxu0 %v1220
    %1329 = vmatprep.subr.mxu0 %v1223
    %1330 = vmatpush1.msra.mxu0 %v1222
    %1331 = vmatprep.subr.mxu0 %v1225
    %1332 = vmatpush1.msra.mxu0 %v1224
    %1333 = vmatprep.subr.mxu0 %v1227
    %1334 = vmatpush1.msra.mxu0 %v1226
    %1335 = vmatprep.subr.mxu0 %v1229
    %1336 = vmatpush1.msra.mxu0 %v1228
    %1337 = vmatprep.subr.mxu0 %v1231
    %1338 = vmatpush1.msra.mxu0 %v1230
    %1339 = vmatprep.subr.mxu0 %v1233
    %1340 = vmatpush1.msra.mxu0 %v1232
    %1341 = vmatprep.subr.mxu0 %v1235
    %1342 = vmatpush1.msra.mxu0 %v1234
    %1343 = vmatprep.subr.mxu0 %v1237
    %1344 = vmatpush1.msra.mxu0 %v1236
    %1345 = vmatprep.subr.mxu0 %v1239
    %1346 = vmatpush1.msra.mxu0 %v1238
    %1347 = vmatprep.subr.mxu0 %v1241
    %1348 = vmatpush1.msra.mxu0 %v1240
    %1349 = vmatprep.subr.mxu0 %v1243
    %1350 = vmatpush1.msra.mxu0 %v1242
    %1351 = vmatprep.subr.mxu0 %v1245
    %1352 = vmatpush1.msra.mxu0 %v1244
    %1353 = vmatprep.subr.mxu0 %v1247
    %1354 = vmatpush1.msra.mxu0 %v1246
    %1355 = vmatprep.subr.mxu0 %v1249
    %1356 = vmatpush1.msra.mxu0 %v1248
    %1357 = vmatprep.subr.mxu0 %v1251
    %1358 = vmatpush1.msra.mxu0 %v1250
    %1359 = vmatprep.subr.mxu0 %v1253
    %1360 = vmatpush1.msra.mxu0 %v1252
    %1361 = vmatprep.subr.mxu0 %v1255
    %1362 = vmatpush1.msra.mxu0 %v1254
    %1363 = vmatprep.subr.mxu0 %v1257
    %1364 = vmatpush1.msra.mxu0 %v1256
    %1365 = vmatprep.subr.mxu0 %v1259
    %1366 = vmatpush1.msra.mxu0 %v1258
    %1367 = vmatprep.subr.mxu0 %v1261
    %1368 = vmatpush1.msra.mxu0 %v1260
    %1369 = vmatprep.mubr.f32.mxu0 %v1303
    %1370 = vmatmul.mubr.f32.gmra.mrb[0].mxu0 %v1294
    %v1371 = vpop.f32.mrb[0].mxu0
    %v1372 = vadd.f32 %v1300, %v1371
    %v1373 = vpop.f32.mrb[0].mxu0
    %v1374 = vadd.f32 %v1300, %v1373
    %1375 = vdwg.mxu0
    %1376 = vmatprep.subr.mxu0 %v1263
    %1377 = vmatpush1.msra.mxu0 %v1262
    %1378 = vmatprep.subr.mxu0 %v1265
    %1379 = vmatpush1.msra.mxu0 %v1264
    %1380 = vmatprep.subr.mxu0 %v1267
    %1381 = vmatpush1.msra.mxu0 %v1266
    %1382 = vmatprep.subr.mxu0 %v1269
    %1383 = vmatpush1.msra.mxu0 %v1268
    %1384 = vmatprep.subr.mxu0 %v1271
    %1385 = vmatpush1.msra.mxu0 %v1270
    %1386 = vmatprep.subr.mxu0 %v1273
    %1387 = vmatpush1.msra.mxu0 %v1272
    %1388 = vmatprep.subr.mxu0 %v1275
    %1389 = vmatpush1.msra.mxu0 %v1274
    %1390 = vmatprep.subr.mxu0 %v1277
    %1391 = vmatpush1.msra.mxu0 %v1276
    %1392 = vmatprep.subr.mxu0 %v1279
    %1393 = vmatpush1.msra.mxu0 %v1278
    %1394 = vmatprep.subr.mxu0 %v1281
    %1395 = vmatpush1.msra.mxu0 %v1280
    %1396 = vmatprep.subr.mxu0 %v1283
    %1397 = vmatpush1.msra.mxu0 %v1282
    %1398 = vmatprep.subr.mxu0 %v1285
    %1399 = vmatpush1.msra.mxu0 %v1284
    %1400 = vmatprep.subr.mxu0 %v1287
    %1401 = vmatpush1.msra.mxu0 %v1286
    %1402 = vmatprep.subr.mxu0 %v1289
    %1403 = vmatpush1.msra.mxu0 %v1288
    %1404 = vmatprep.subr.mxu0 %v1291
    %1405 = vmatpush1.msra.mxu0 %v1290
    %1406 = vmatprep.subr.mxu0 %v1293
    %1407 = vmatpush1.msra.mxu0 %v1292
    %1408 = vmatprep.subr.mxu0 0.0
    %1409 = vmatpush1.msra.mxu0 0.0
    %1410 = vmatprep.subr.mxu0 0.0
    %1411 = vmatpush1.msra.mxu0 0.0
    %1412 = vmatprep.subr.mxu0 0.0
    %1413 = vmatpush1.msra.mxu0 0.0
    %1414 = vmatprep.subr.mxu0 0.0
    %1415 = vmatpush1.msra.mxu0 0.0
    %1416 = vmatprep.subr.mxu0 0.0
    %1417 = vmatpush1.msra.mxu0 0.0
    %1418 = vmatprep.subr.mxu0 0.0
    %1419 = vmatpush1.msra.mxu0 0.0
    %1420 = vmatprep.subr.mxu0 0.0
    %1421 = vmatpush1.msra.mxu0 0.0
    %1422 = vmatprep.subr.mxu0 0.0
    %1423 = vmatpush1.msra.mxu0 0.0
    %1424 = vmatprep.subr.mxu0 0.0
    %1425 = vmatpush1.msra.mxu0 0.0
    %1426 = vmatprep.subr.mxu0 0.0
    %1427 = vmatpush1.msra.mxu0 0.0
    %1428 = vmatprep.subr.mxu0 0.0
    %1429 = vmatpush1.msra.mxu0 0.0
    %1430 = vmatprep.subr.mxu0 0.0
    %1431 = vmatpush1.msra.mxu0 0.0
    %1432 = vmatprep.subr.mxu0 0.0
    %1433 = vmatpush1.msra.mxu0 0.0
    %1434 = vmatprep.subr.mxu0 0.0
    %1435 = vmatpush1.msra.mxu0 0.0
    %1436 = vmatprep.subr.mxu0 0.0
    %1437 = vmatpush1.msra.mxu0 0.0
    %1438 = vmatprep.subr.mxu0 0.0
    %1439 = vmatpush1.msra.mxu0 0.0
    %1440 = vmatprep.mubr.f32.mxu0 0.0
    %1441 = vmatmul.mubr.f32.gmra.mrb[0].mxu0 %v1295
    %v1442 = vpop.f32.mrb[0].mxu0
    %v1443 = vadd.f32 %v1372, %v1442
    %v1444 = vpop.f32.mrb[0].mxu0
    %v1445 = vadd.f32 %v1374, %v1444
    %1446 = vdwg.mxu0
    %v1449 = vcombine.low %v1443, %v1445
    %1451 = vst [vmem:[#allocation2] sm:$0xff] %v1449
    // Predicated region
    $region22: #{tpu_custom_call.1} parent=1 // pred_check
      _
    $region23: #{tpu_custom_call.1} parent=1 // pred_check_branch
      %1453 = sbr.rel (0) target = $region25
    $region24: #{tpu_custom_call.1} parent=1 // pred_region
      %s1455 = ssub.s32 128, 128
      %1456 = vsyncadd [#allocation3], %s1455
      %s1458 = sshll.u32 [#allocation2], 4
      %s1459 = int_to_ptr.vmem [resolvable:$true] %s1458
      %1461 = dma.vmem_to_hbm [thread:$0]  %s1459, 128, %s5, [#allocation3]
    $region25: #{tpu_custom_call.1} parent=1 // pred_fallthru
      _
    // Predicated region
    $region26: #{tpu_custom_call.1} parent=1 // pred_check
      _
    $region27: #{tpu_custom_call.1} parent=1 // pred_check_branch
      %1463 = sbr.rel (0) target = $region29
    $region28: #{tpu_custom_call.1} parent=1 // pred_region
      %1464 = dma.done [#allocation3], 128
    $region29: #{tpu_custom_call.1} parent=1 // pred_fallthru
      _
    %1465 = vsyncpa [#allocation3], 1

</llo_original>
